<compile_context>
chip_gen: v6e
topology: v6e:2x2x1
jax: 0.10.0
libtpu: 0.0.40
codegen_flags: <defaults>
</compile_context>

<pallas_src>
import jax
import jax.numpy as jnp
from jax.experimental import pallas as pl
from jax.experimental.pallas import tpu as pltpu

# ----------------------------- configuration --------------------------------
# layer_parameters format: [(in_channels, out_channels, kernel_size), ...]
LAYER_PARAMETERS = ((4, 6, 1), (4, 8, 3), (4, 10, 5))
BATCH   = 2
CIN     = LAYER_PARAMETERS[0][0]          # all branches consume the same input
SEQ_LEN = 16
BN_EPS  = 1e-5

_LEFTS    = tuple((k - 1) // 2 for _, _, k in LAYER_PARAMETERS)   # ConstantPad1d left
_RIGHTS   = tuple(k // 2 for _, _, k in LAYER_PARAMETERS)         # ConstantPad1d right
MAX_LEFT  = max(_LEFTS)
MAX_RIGHT = max(_RIGHTS)
U_TAPS    = MAX_LEFT + MAX_RIGHT + 1          # shared tap window across branches
K_DIM     = U_TAPS * CIN                      # im2col contraction size
C_TOTAL   = sum(c for _, c, _ in LAYER_PARAMETERS)
C_PAD     = 128                               # lane-dense output channel padding
M_ROWS    = BATCH * SEQ_LEN                   # flattened MXU M dimension


# ------------------------------- kernel --------------------------------------
def _parameterized_layer_kernel(lhs_ref, w_ref, gb_ref, out_ref):
    """lhs_ref: [B*L, U_TAPS*CIN]   im2col of the zero-padded channels-last input
       w_ref:   [U_TAPS*CIN, C_PAD] fused tap-aligned conv weights (all branches,
                                    zero-padded columns beyond C_TOTAL)
       gb_ref:  [2, C_PAD]          row 0 = BN gamma, row 1 = BN beta
       out_ref: [B*L, C_PAD]        lane-dense output (wrapper slices to C_TOTAL)"""
    # Whole multi-branch conv + channel concat == one MXU matmul.
    y = jnp.dot(lhs_ref[...], w_ref[...], preferred_element_type=jnp.float32)

    # BatchNorm1d, training-mode batch statistics per channel over (batch, length),
    # single pass (sum / sum of squares, f32), affine folded into one scale/shift.
    inv_n = jnp.float32(1.0 / M_ROWS)
    mean  = jnp.sum(y, axis=0, keepdims=True) * inv_n
    ex2   = jnp.sum(y * y, axis=0, keepdims=True) * inv_n
    var   = ex2 - mean * mean                       # biased variance, as in PyTorch
    gb    = gb_ref[...]
    scale = gb[0:1, :] * jax.lax.rsqrt(var + BN_EPS)
    shift = gb[1:2, :] - mean * scale

    # F.relu(torch.cat(..., dim=1)) -- concat is already realized by the column layout.
    out_ref[...] = jnp.maximum(y * scale + shift, 0.0)


# ----------------------------- parameter prep --------------------------------
def init_params(key):
    """Per-branch params in PyTorch layout: conv weight [Cout, Cin, k], bias [Cout],
    BatchNorm1d affine gamma=1 / beta=0."""
    params = []
    for cin, cout, k in LAYER_PARAMETERS:
        key, kw, kb = jax.random.split(key, 3)
        bound = 1.0 / float(cin * k) ** 0.5
        params.append(dict(
            w=jax.random.uniform(kw, (cout, cin, k), jnp.float32, -bound, bound),
            b=jax.random.uniform(kb, (cout,), jnp.float32, -bound, bound),
            gamma=jnp.ones((cout,), jnp.float32),
            beta=jnp.zeros((cout,), jnp.float32),
        ))
    return params


def pack_params(params):
    """Done ONCE at init (hoisted out of the forward): fuse all branches into one
    tap-aligned im2col weight [U_TAPS*CIN, C_PAD] plus a stacked [2, C_PAD] gamma/beta.
    Column order == PyTorch channel-concat order.  Conv biases are intentionally not
    packed: they cancel exactly under training-mode BatchNorm."""
    w_packed = jnp.zeros((K_DIM, C_PAD), jnp.float32)
    gamma = jnp.zeros((C_PAD,), jnp.float32)
    beta  = jnp.zeros((C_PAD,), jnp.float32)
    col = 0
    for (cin, cout, k), br in zip(LAYER_PARAMETERS, params):
        u0 = MAX_LEFT - (k - 1) // 2                    # branch tap alignment offset
        for t in range(k):
            u = u0 + t
            # rows u*CIN .. u*CIN+CIN-1 hold tap t of this branch: [cin, cout]
            w_packed = w_packed.at[u * CIN:(u + 1) * CIN, col:col + cout].set(
                jnp.transpose(br["w"][:, :, t], (1, 0)))
        gamma = gamma.at[col:col + cout].set(br["gamma"])
        beta  = beta.at[col:col + cout].set(br["beta"])
        col += cout
    gb = jnp.stack([gamma, beta], axis=0)               # [2, C_PAD]
    return {"w": w_packed, "gb": gb}


# ------------------------------- forward -------------------------------------
@jax.jit
def parameterized_layer_forward(x, w_packed, gb):
    """x: [batch, in_channels, length] -> [batch, sum(out_channels), length]"""
    b, cin, length = x.shape
    # Layout glue: channels-last, zero-pad length with the shared halo, build im2col.
    xt = jnp.transpose(x, (0, 2, 1))                                   # [B, L, CIN]
    xp = jnp.pad(xt, ((0, 0), (MAX_LEFT, MAX_RIGHT), (0, 0)))          # [B, L_PAD, CIN]
    cols = jnp.stack([xp[:, u:u + length, :] for u in range(U_TAPS)], axis=2)
    lhs = cols.reshape(b * length, U_TAPS * cin)                       # [B*L, K_DIM]

    y = pl.pallas_call(
        _parameterized_layer_kernel,
        out_shape=jax.ShapeDtypeStruct((b * length, C_PAD), jnp.float32),
        in_specs=[pl.BlockSpec(memory_space=pltpu.MemorySpace.VMEM)] * 3,
        out_specs=pl.BlockSpec(memory_space=pltpu.MemorySpace.VMEM),
    )(lhs, w_packed, gb)

    y = y[:, :C_TOTAL]                                                 # drop lane pad
    return jnp.transpose(y.reshape(b, length, C_TOTAL), (0, 2, 1))


# ----------------------------- pure-JAX reference ----------------------------
def _reference_forward(x, params):
    outs = []
    for (cin, cout, k), br in zip(LAYER_PARAMETERS, params):
        left, right = (k - 1) // 2, k // 2
        xpad = jnp.pad(x, ((0, 0), (0, 0), (left, right)))
        y = jax.lax.conv_general_dilated(
            xpad, br["w"], window_strides=(1,), padding="VALID",
            dimension_numbers=("NCH", "OIH", "NCH"),
            precision=jax.lax.Precision.HIGHEST)
        y = y + br["b"][None, :, None]        # bias kept here; cancelled by batch-stat BN
        mean = jnp.mean(y, axis=(0, 2), keepdims=True)
        var = jnp.mean((y - mean) ** 2, axis=(0, 2), keepdims=True)
        y = (y - mean) * jax.lax.rsqrt(var + BN_EPS)
        y = y * br["gamma"][None, :, None] + br["beta"][None, :, None]
        outs.append(y)
    return jax.nn.relu(jnp.concatenate(outs, axis=1))


if __name__ == "__main__":
    key = jax.random.PRNGKey(0)
    kx, kp = jax.random.split(key)
    x = jax.random.normal(kx, (BATCH, CIN, SEQ_LEN), jnp.float32)
    params = init_params(kp)
    packed = pack_params(params)              # packed once, outside the hot path

    out = parameterized_layer_forward(x, packed["w"], packed["gb"])
    jax.block_until_ready(out)

    assert out.shape == (BATCH, C_TOTAL, SEQ_LEN)
    assert bool(jnp.all(jnp.isfinite(out)))

    ref = _reference_forward(x, params)
    assert bool(jnp.allclose(out, ref, atol=1e-3, rtol=1e-3)), "mismatch vs reference"

    print("KERNEL_OK")
</pallas_src>

<mosaic_0001>
module attributes {stable_mosaic.version = 11 : i64} {
  func.func @_parameterized_layer_kernel(%arg0: memref<32x20xf32, #tpu.memory_space<vmem>>, %arg1: memref<20x128xf32, #tpu.memory_space<vmem>>, %arg2: memref<2x128xf32, #tpu.memory_space<vmem>>, %arg3: memref<32x128xf32, #tpu.memory_space<vmem>>) attributes {dimension_semantics = [], scalar_prefetch = 0 : i64, scratch_operands = 0 : i64, tpu.core_type = #tpu.core_type<tc>} {
    %c0 = arith.constant 0 : index
    %c0_0 = arith.constant 0 : index
    %0 = vector.load %arg0[%c0, %c0_0] : memref<32x20xf32, #tpu.memory_space<vmem>>, vector<32x20xf32>
    %c0_1 = arith.constant 0 : index
    %c0_2 = arith.constant 0 : index
    %1 = vector.load %arg1[%c0_1, %c0_2] : memref<20x128xf32, #tpu.memory_space<vmem>>, vector<20x128xf32>
    %cst = arith.constant dense<0.000000e+00> : vector<32x128xf32>
    %2 = tpu.matmul %0, %1, %cst {dimension_numbers = #tpu.dot_dimension_numbers<[1], [0], [0], [1], [0, 0, 1, 1], [], []>} : vector<32x20xf32>, vector<20x128xf32>, vector<32x128xf32> -> vector<32x128xf32>
    %cst_3 = arith.constant dense<0.000000e+00> : vector<128xf32>
    %3 = vector.multi_reduction <add>, %2, %cst_3 [0] : vector<32x128xf32> to vector<128xf32>
    %4 = vector.shape_cast %3 : vector<128xf32> to vector<1x128xf32>
    %cst_4 = arith.constant 3.125000e-02 : f32
    %5 = vector.broadcast %cst_4 : f32 to vector<1x128xf32>
    %6 = arith.mulf %4, %5 : vector<1x128xf32>
    %7 = arith.mulf %2, %2 : vector<32x128xf32>
    %cst_5 = arith.constant dense<0.000000e+00> : vector<128xf32>
    %8 = vector.multi_reduction <add>, %7, %cst_5 [0] : vector<32x128xf32> to vector<128xf32>
    %9 = vector.shape_cast %8 : vector<128xf32> to vector<1x128xf32>
    %cst_6 = arith.constant 3.125000e-02 : f32
    %10 = vector.broadcast %cst_6 : f32 to vector<1x128xf32>
    %11 = arith.mulf %9, %10 : vector<1x128xf32>
    %12 = arith.mulf %6, %6 : vector<1x128xf32>
    %13 = arith.subf %11, %12 : vector<1x128xf32>
    %c0_7 = arith.constant 0 : index
    %c0_8 = arith.constant 0 : index
    %14 = vector.load %arg2[%c0_7, %c0_8] : memref<2x128xf32, #tpu.memory_space<vmem>>, vector<2x128xf32>
    %15 = vector.extract_strided_slice %14 {offsets = [0, 0], sizes = [1, 128], strides = [1, 1]} : vector<2x128xf32> to vector<1x128xf32>
    %cst_9 = arith.constant 9.99999974E-6 : f32
    %16 = vector.broadcast %cst_9 : f32 to vector<1x128xf32>
    %17 = arith.addf %13, %16 : vector<1x128xf32>
    %18 = math.rsqrt %17 : vector<1x128xf32>
    %19 = arith.mulf %15, %18 : vector<1x128xf32>
    %20 = vector.extract_strided_slice %14 {offsets = [1, 0], sizes = [1, 128], strides = [1, 1]} : vector<2x128xf32> to vector<1x128xf32>
    %21 = arith.mulf %6, %19 : vector<1x128xf32>
    %22 = arith.subf %20, %21 : vector<1x128xf32>
    %23 = vector.broadcast %19 : vector<1x128xf32> to vector<32x128xf32>
    %24 = arith.mulf %2, %23 : vector<32x128xf32>
    %25 = vector.broadcast %22 : vector<1x128xf32> to vector<32x128xf32>
    %26 = arith.addf %24, %25 : vector<32x128xf32>
    %cst_10 = arith.constant 0.000000e+00 : f32
    %27 = vector.broadcast %cst_10 : f32 to vector<32x128xf32>
    %28 = arith.maximumf %26, %27 : vector<32x128xf32>
    %c0_11 = arith.constant 0 : index
    %c0_12 = arith.constant 0 : index
    %29 = vector.load %arg3[%c0_11, %c0_12] : memref<32x128xf32, #tpu.memory_space<vmem>>, vector<32x128xf32>
    tpu.vector_store %arg3[%c0_11, %c0_12], %28 {strides = array<i32>} : memref<32x128xf32, #tpu.memory_space<vmem>>, vector<32x128xf32>,
    return
  }
}

</mosaic_0001>

<llo_original>
// kernel: parameterized_layer_forward.1
$region0: #{parameterized_layer_forward.1}
  #allocation0 [shape = 'u32[]', space=smem, size = 0x4, offset = 0x4, fixed_abs, tag = 'smem constant byte address 0x4 - core index']
  #allocation1 [shape = 'u32[144,128]{1,0:T(1,128)}', space=vmem, size = 0x12000, scoped, tag = 'internal scratch']
  %s0 = inlined_call_operand.vmem [shape: f32[32,20], index: 0, kind: input, shape index: {}]
  %s1 = inlined_call_operand.vmem [shape: f32[20,128], index: 1, kind: input, shape index: {}]
  %s2 = inlined_call_operand.vmem [shape: f32[2,128], index: 2, kind: input, shape index: {}]
  %s3 = inlined_call_operand.hbm [shape: f32[32,128], index: 3, kind: output, shape index: {}]
  %s4 = sld [smem:[#allocation0]]
  $region22: #{parameterized_layer_forward.1} parent=0
    _
  %s6 = ssub.s32 1, %s4
  %s7 = scalar_select 0, %s6, %s4
  $region1: #{parameterized_layer_forward.1} parent=0
    #allocation2 [shape = 'u8[16384]{0}', space=vmem, size = 0x4000, scoped, tag = 'output window, operand 0, single buffered']
    #allocation3 [shape = 's32[1]{0}', space=sflag, size = 0x4, scoped, tag = 'scoped memory for parameterized_layer_forward.1']
    %8 = vsyncpa [#allocation3], 0
    // Predicated region
    $region2: #{parameterized_layer_forward.1} parent=1 // pred_check
      _
    $region3: #{parameterized_layer_forward.1} parent=1 // pred_check_branch
      %10 = sbr.rel (0) target = $region5
    $region4: #{parameterized_layer_forward.1} parent=1 // pred_region
      _
    $region5: #{parameterized_layer_forward.1} parent=1 // pred_fallthru
      _
    // Predicated region
    $region6: #{parameterized_layer_forward.1} parent=1 // pred_check
      _
    $region7: #{parameterized_layer_forward.1} parent=1 // pred_check_branch
      %12 = sbr.rel (0) target = $region9
    $region8: #{parameterized_layer_forward.1} parent=1 // pred_region
      _
    $region9: #{parameterized_layer_forward.1} parent=1 // pred_fallthru
      _
    // Predicated region
    $region10: #{parameterized_layer_forward.1} parent=1 // pred_check
      _
    $region11: #{parameterized_layer_forward.1} parent=1 // pred_check_branch
      %14 = sbr.rel (0) target = $region13
    $region12: #{parameterized_layer_forward.1} parent=1 // pred_region
      _
    $region13: #{parameterized_layer_forward.1} parent=1 // pred_fallthru
      _
    %v15 = vld [vmem:[%s0] sm:$0xff]
    %v16 = vld [vmem:[%s0 + $0x8] sm:$0xff]
    %v17 = vld [vmem:[%s0 + $0x10] sm:$0xff]
    %v18 = vld [vmem:[%s0 + $0x18] sm:$0xff]
    %v19 = vld [vmem:[%s1] sm:$0xff]
    %v20 = vld [vmem:[%s1 + $0x8] sm:$0xff]
    %v21 = vld [vmem:[%s1 + $0x10] sm:$0xf]
    %vm22 = vcmask 162816
    %v24 = vsel %vm22, %v15, 0
    %v27 = vsel %vm22, %v16, 0
    %v30 = vsel %vm22, %v17, 0
    %v33 = vsel %vm22, %v18, 0
    %vm35 = vcmask 1043456
    %v37 = vsel %vm35, %v21, 0
    %39 = vmatprep.subr.mxu0 0.0
    %40 = vmatpush1.msra.mxu0 0.0
    %41 = vmatprep.subr.mxu0 0.0
    %42 = vmatpush1.msra.mxu0 0.0
    %43 = vmatprep.subr.mxu0 0.0
    %44 = vmatpush1.msra.mxu0 0.0
    %45 = vmatprep.subr.mxu0 0.0
    %46 = vmatpush1.msra.mxu0 0.0
    %47 = vmatprep.subr.mxu0 0.0
    %48 = vmatpush1.msra.mxu0 0.0
    %49 = vmatprep.subr.mxu0 0.0
    %50 = vmatpush1.msra.mxu0 0.0
    %51 = vmatprep.subr.mxu0 0.0
    %52 = vmatpush1.msra.mxu0 0.0
    %53 = vmatprep.subr.mxu0 0.0
    %54 = vmatpush1.msra.mxu0 0.0
    %55 = vmatprep.subr.mxu0 0.0
    %56 = vmatpush1.msra.mxu0 0.0
    %57 = vmatprep.subr.mxu0 0.0
    %58 = vmatpush1.msra.mxu0 0.0
    %59 = vmatprep.subr.mxu0 0.0
    %60 = vmatpush1.msra.mxu0 0.0
    %61 = vmatprep.subr.mxu0 0.0
    %62 = vmatpush1.msra.mxu0 0.0
    %63 = vmatprep.subr.mxu0 0.0
    %64 = vmatpush1.msra.mxu0 0.0
    %65 = vmatprep.subr.mxu0 0.0
    %66 = vmatpush1.msra.mxu0 %v37
    %67 = vmatprep.subr.mxu0 0.0
    %68 = vmatpush1.msra.mxu0 %v20
    %69 = vmatprep.subr.mxu0 0.0
    %70 = vmatpush1.msra.mxu0 %v19
    %71 = vmatprep.subr.mxu0 0.0
    %72 = vmatpush2.msra.mxu0 0.0
    %73 = vmatprep.subr.mxu0 0.0
    %74 = vmatpush2.msra.mxu0 0.0
    %75 = vmatprep.subr.mxu0 0.0
    %76 = vmatpush2.msra.mxu0 0.0
    %77 = vmatprep.subr.mxu0 0.0
    %78 = vmatpush2.msra.mxu0 0.0
    %79 = vmatprep.subr.mxu0 0.0
    %80 = vmatpush2.msra.mxu0 0.0
    %81 = vmatprep.subr.mxu0 0.0
    %82 = vmatpush2.msra.mxu0 0.0
    %83 = vmatprep.subr.mxu0 0.0
    %84 = vmatpush2.msra.mxu0 0.0
    %85 = vmatprep.subr.mxu0 0.0
    %86 = vmatpush2.msra.mxu0 0.0
    %87 = vmatprep.subr.mxu0 0.0
    %88 = vmatpush2.msra.mxu0 0.0
    %89 = vmatprep.subr.mxu0 0.0
    %90 = vmatpush2.msra.mxu0 0.0
    %91 = vmatprep.subr.mxu0 0.0
    %92 = vmatpush2.msra.mxu0 0.0
    %93 = vmatprep.subr.mxu0 0.0
    %94 = vmatpush2.msra.mxu0 0.0
    %95 = vmatprep.subr.mxu0 0.0
    %96 = vmatpush2.msra.mxu0 0.0
    %97 = vmatprep.subr.mxu0 0.0
    %98 = vmatpush2.msra.mxu0 0.0
    %99 = vmatprep.subr.mxu0 0.0
    %100 = vmatpush2.msra.mxu0 0.0
    %101 = vmatprep.subr.mxu0 0.0
    %102 = vmatpush2.msra.mxu0 0.0
    %103 = vmatprep.mubr.f32.mxu0 0.0
    %104 = vmatmul.mubr.f32.gmra.mxu0 %v24
    %v105 = vpop.f32.mrf.mxu0
    %v106 = vadd.f32 0.0, %v105
    %v107 = vpop.f32.mrf.mxu0
    %108 = vmatprep.mubr.f32.mxu0 0.0
    %109 = vmatmul.mubr.f32.gmra.mxu0 %v27
    %v110 = vpop.f32.mrf.mxu0
    %v111 = vadd.f32 0.0, %v110
    %v112 = vpop.f32.mrf.mxu0
    %113 = vmatprep.mubr.f32.mxu0 0.0
    %114 = vmatmul.mubr.f32.gmra.mxu0 %v30
    %v115 = vpop.f32.mrf.mxu0
    %v116 = vadd.f32 0.0, %v115
    %v117 = vpop.f32.mrf.mxu0
    %118 = vmatprep.mubr.f32.mxu0 0.0
    %119 = vmatmul.mubr.f32.gmra.mxu0 %v33
    %v120 = vpop.f32.mrf.mxu0
    %v121 = vadd.f32 0.0, %v120
    %v122 = vpop.f32.mrf.mxu0
    %123 = vdwg.mxu0
    %v124 = vadd.f32 %v106, %v111
    %v125 = vadd.f32 %v124, %v116
    %v126 = vadd.f32 %v125, %v121
    %v127 = vrot.slane %v126, 4
    %v128 = vadd.f32 %v126, %v127
    %v129 = vrot.slane %v128, 2
    %v130 = vadd.f32 %v128, %v129
    %v131 = vrot.slane %v130, 1
    %v132 = vadd.f32 %v130, %v131
    %v133 = vmul.f32 %v132, 0.03125
    %v134 = vmul.f32 %v106, %v106
    %v135 = vmul.f32 %v111, %v111
    %v136 = vmul.f32 %v116, %v116
    %v137 = vmul.f32 %v121, %v121
    %v138 = vadd.f32 %v134, %v135
    %v139 = vadd.f32 %v138, %v136
    %v140 = vadd.f32 %v139, %v137
    %v141 = vrot.slane %v140, 4
    %v142 = vadd.f32 %v140, %v141
    %v143 = vrot.slane %v142, 2
    %v144 = vadd.f32 %v142, %v143
    %v145 = vrot.slane %v144, 1
    %v146 = vadd.f32 %v144, %v145
    %v147 = vmul.f32 %v146, 0.03125
    %v148 = vmul.f32 %v133, %v133
    %v149 = vsub.f32 %v147, %v148
    %v150 = vld [vmem:[%s2] sm:$0x3]
    %v151 = vadd.f32 %v149, 1e-05
    %v152 = vrsqrt.pop %v151
    %v153 = vmul.f32 %v150, %v152
    %v154 = vmul.f32 %v133, %v153
    %v156 = vrot.slane %v154, 7
    %v158 = vsub.f32 %v150, %v156
    %v159 = vlaneseq
    %v160 = vshrl.u32 %v159, 7
    %v161 = vsub.s32 0, %v160
    %v162 = vrot.slane %v153, %v161
    %v163 = vmul.f32 %v106, %v162
    %v164 = vmul.f32 %v111, %v162
    %v165 = vmul.f32 %v116, %v162
    %v166 = vmul.f32 %v121, %v162
    %v167 = vlaneseq
    %v168 = vshrl.u32 %v167, 7
    %v169 = vsub.s32 1, %v168
    %v170 = vrot.slane %v158, %v169
    %v171 = vadd.f32 %v163, %v170
    %v172 = vadd.f32 %v164, %v170
    %v173 = vadd.f32 %v165, %v170
    %v174 = vadd.f32 %v166, %v170
    %v175 = vmax.f32 %v171, 0.0
    %v176 = vmax.f32 %v172, 0.0
    %v177 = vmax.f32 %v173, 0.0
    %v178 = vmax.f32 %v174, 0.0
    %179 = vst [vmem:[#allocation2] sm:$0xff] %v175
    %180 = vst [vmem:[#allocation2 + $0x8] sm:$0xff] %v176
    %181 = vst [vmem:[#allocation2 + $0x10] sm:$0xff] %v177
    %182 = vst [vmem:[#allocation2 + $0x18] sm:$0xff] %v178
    // Predicated region
    $region14: #{parameterized_layer_forward.1} parent=1 // pred_check
      _
    $region15: #{parameterized_layer_forward.1} parent=1 // pred_check_branch
      %184 = sbr.rel (0) target = $region17
    $region16: #{parameterized_layer_forward.1} parent=1 // pred_region
      %s186 = ssub.s32 512, 512
      %187 = vsyncadd [#allocation3], %s186
      %s188 = sshll.u32 [#allocation2], 4
      %s189 = int_to_ptr.vmem [resolvable:$true] %s188
      %194 = dma.vmem_to_hbm [thread:$0]  %s189, 512, %s3, [#allocation3], 128, 128, 8
    $region17: #{parameterized_layer_forward.1} parent=1 // pred_fallthru
      _
    // Predicated region
    $region18: #{parameterized_layer_forward.1} parent=1 // pred_check
      _
    $region19: #{parameterized_layer_forward.1} parent=1 // pred_check_branch
      %196 = sbr.rel (0) target = $region21
    $region20: #{parameterized_layer_forward.1} parent=1 // pred_region
      %197 = dma.done [#allocation3], 512
    $region21: #{parameterized_layer_forward.1} parent=1 // pred_fallthru
      _
    %198 = vsyncpa [#allocation3], 1

</llo_original>
